<compile_context>
chip_gen: v7x
topology: tpu7x:2x2x1
jax: 0.10.0
libtpu: 0.0.40
codegen_flags: <defaults>
</compile_context>

<pallas_src>
import functools

import jax
import jax.numpy as jnp
from jax.experimental import pallas as pl
from jax.experimental.pallas import tpu as pltpu


def ddpg_actor_kernel(x_ref,
                      w1_ref, b1_ref,
                      w2_ref, b2_ref,
                      w3_ref, b3_ref,
                      wmu_ref, bmu_ref,
                      gamma_ref, beta_ref,
                      out_ref,
                      *, max_action, ln_eps):
    # fc1 + relu   (bf16 MXU operands, f32 accumulation, f32 elementwise)
    h = jnp.dot(x_ref[...].astype(jnp.bfloat16), w1_ref[...],
                preferred_element_type=jnp.float32) + b1_ref[...]
    h = jnp.maximum(h, 0.0)

    # fc2 + relu
    h = jnp.dot(h.astype(jnp.bfloat16), w2_ref[...],
                preferred_element_type=jnp.float32) + b2_ref[...]
    h = jnp.maximum(h, 0.0)

    # fc3 + relu
    h = jnp.dot(h.astype(jnp.bfloat16), w3_ref[...],
                preferred_element_type=jnp.float32) + b3_ref[...]
    h = jnp.maximum(h, 0.0)

    # fc_mu (tiny N = action_dim; negligible MXU work, result stays in f32)
    mu = jnp.dot(h.astype(jnp.bfloat16), wmu_ref[...],
                 preferred_element_type=jnp.float32) + bmu_ref[...]

    # LayerNorm over action_dim (biased variance, matching torch.nn.LayerNorm)
    mean = jnp.mean(mu, axis=-1, keepdims=True)
    cent = mu - mean
    var = jnp.mean(cent * cent, axis=-1, keepdims=True)
    mu_n = cent * jax.lax.rsqrt(var + ln_eps) * gamma_ref[...] + beta_ref[...]

    # (tanh(.) + max_action) / 2
    out_ref[...] = ((jnp.tanh(mu_n) + max_action) * 0.5).astype(out_ref.dtype)


def ddpg_actor_forward(x, params, *, max_action, ln_eps, block_b=None):
    """Run the DDPGActor forward pass in a single Pallas kernel.

    x:      [B, state_dim] float32
    params: dict of w1,b1,w2,b2,w3,b3,w_mu,b_mu,gamma,beta
            (weights [in, out] bf16, biases/gamma/beta [1, out] f32)
    """
    batch, state_dim = x.shape
    action_dim = params["w_mu"].shape[1]
    fc1 = params["w1"].shape[1]
    fc2 = params["w2"].shape[1]
    fc3 = params["w3"].shape[1]

    # Batch tile: multiple of 8 sublanes (or the full batch), dividing B.
    if block_b is None:
        block_b = batch
        for cand in (512, 256, 128, 64, 32, 16, 8):
            if batch % cand == 0:
                block_b = cand
                break
    assert batch % block_b == 0, "batch must be divisible by block_b"
    grid = (batch // block_b,)

    def batch_spec(nfeat):
        # Tiled along the batch axis, pipelined across grid steps.
        return pl.BlockSpec((block_b, nfeat), lambda i: (i, 0))

    def resident_spec(shape):
        # Same block index every step -> loaded once, stays VMEM-resident.
        return pl.BlockSpec(shape, lambda i: (0, 0))

    args = (x,
            params["w1"], params["b1"],
            params["w2"], params["b2"],
            params["w3"], params["b3"],
            params["w_mu"], params["b_mu"],
            params["gamma"], params["beta"])

    in_specs = [batch_spec(state_dim)] + [resident_spec(a.shape) for a in args[1:]]

    flops = 2 * batch * (state_dim * fc1 + fc1 * fc2 + fc2 * fc3 + fc3 * action_dim)
    bytes_accessed = (sum(a.size * a.dtype.itemsize for a in args)
                      + batch * action_dim * 4)

    kernel = functools.partial(ddpg_actor_kernel,
                               max_action=float(max_action),
                               ln_eps=float(ln_eps))

    return pl.pallas_call(
        kernel,
        out_shape=jax.ShapeDtypeStruct((batch, action_dim), jnp.float32),
        grid=grid,
        in_specs=in_specs,
        out_specs=batch_spec(action_dim),
        compiler_params=pltpu.CompilerParams(
            dimension_semantics=("parallel",),   # batch axis: megacore-shardable
            vmem_limit_bytes=32 * 1024 * 1024),
        cost_estimate=pl.CostEstimate(
            flops=flops,
            transcendentals=batch * (action_dim + 1),  # tanh + rsqrt per row
            bytes_accessed=bytes_accessed),
    )(*args)


def init_params(key, state_dim, action_dim, fc1_dim, fc2_dim, fc3_dim):
    """Deterministic synthetic init (PyTorch-Linear-style uniform bounds)."""
    ks = jax.random.split(key, 8)

    def linear(kw, kb, fan_in, fan_out):
        bound = 1.0 / jnp.sqrt(fan_in)
        w = jax.random.uniform(kw, (fan_in, fan_out), jnp.float32, -bound, bound)
        b = jax.random.uniform(kb, (1, fan_out), jnp.float32, -bound, bound)
        # Weights stored bf16 (MXU-native); biases stay f32.
        return w.astype(jnp.bfloat16), b

    w1, b1 = linear(ks[0], ks[1], state_dim, fc1_dim)
    w2, b2 = linear(ks[2], ks[3], fc1_dim, fc2_dim)
    w3, b3 = linear(ks[4], ks[5], fc2_dim, fc3_dim)
    w_mu, b_mu = linear(ks[6], ks[7], fc3_dim, action_dim)

    # LayerNorm affine params (PyTorch default init: gamma=1, beta=0).
    gamma = jnp.ones((1, action_dim), jnp.float32)
    beta = jnp.zeros((1, action_dim), jnp.float32)

    return {"w1": w1, "b1": b1, "w2": w2, "b2": b2, "w3": w3, "b3": b3,
            "w_mu": w_mu, "b_mu": b_mu, "gamma": gamma, "beta": beta}


def reference_forward(x, params, *, max_action, ln_eps):
    """Pure-JAX reference matching the PyTorch module semantics (same dtypes)."""
    def lin(h, w, b):
        return jnp.dot(h.astype(jnp.bfloat16), w,
                       preferred_element_type=jnp.float32) + b

    h = jax.nn.relu(lin(x, params["w1"], params["b1"]))
    h = jax.nn.relu(lin(h, params["w2"], params["b2"]))
    h = jax.nn.relu(lin(h, params["w3"], params["b3"]))
    mu = lin(h, params["w_mu"], params["b_mu"])

    mean = jnp.mean(mu, axis=-1, keepdims=True)
    var = jnp.mean((mu - mean) ** 2, axis=-1, keepdims=True)
    mu_n = (mu - mean) / jnp.sqrt(var + ln_eps) * params["gamma"] + params["beta"]
    return (jnp.tanh(mu_n) + max_action) / 2.0


if __name__ == "__main__":
    # Small shapes consistent with the module's forward.
    batch, state_dim, action_dim = 32, 16, 4
    fc1_dim, fc2_dim, fc3_dim = 64, 64, 32
    max_action = 1.0
    ln_eps = 1e-5

    key = jax.random.PRNGKey(0)
    k_x, k_params = jax.random.split(key, 2)

    x = jax.random.normal(k_x, (batch, state_dim), jnp.float32)
    params = init_params(k_params, state_dim, action_dim,
                         fc1_dim, fc2_dim, fc3_dim)

    out = ddpg_actor_forward(x, params, max_action=max_action, ln_eps=ln_eps,
                             block_b=8)   # grid=(4,) exercises the batch pipeline
    out = jax.block_until_ready(out)

    ref = reference_forward(x, params, max_action=max_action, ln_eps=ln_eps)
    assert out.shape == (batch, action_dim)
    assert bool(jnp.all(jnp.isfinite(out)))
    assert jnp.allclose(out, ref, atol=5e-3, rtol=5e-3), "mismatch vs reference"

    print("KERNEL_OK")
</pallas_src>

<mosaic_0001>
module attributes {stable_mosaic.version = 11 : i64} {
  func.func @ddpg_actor_kernel(%arg0: i32, %arg1: memref<8x16xf32, #tpu.memory_space<vmem>>, %arg2: memref<16x64xbf16, #tpu.memory_space<vmem>>, %arg3: memref<1x64xf32, #tpu.memory_space<vmem>>, %arg4: memref<64x64xbf16, #tpu.memory_space<vmem>>, %arg5: memref<1x64xf32, #tpu.memory_space<vmem>>, %arg6: memref<64x32xbf16, #tpu.memory_space<vmem>>, %arg7: memref<1x32xf32, #tpu.memory_space<vmem>>, %arg8: memref<32x4xbf16, #tpu.memory_space<vmem>>, %arg9: memref<1x4xf32, #tpu.memory_space<vmem>>, %arg10: memref<1x4xf32, #tpu.memory_space<vmem>>, %arg11: memref<1x4xf32, #tpu.memory_space<vmem>>, %arg12: memref<8x4xf32, #tpu.memory_space<vmem>>) attributes {dimension_semantics = [#tpu.dimension_semantics<parallel>], iteration_bounds = array<i64: 4>, scalar_prefetch = 0 : i64, scratch_operands = 0 : i64, tpu.core_type = #tpu.core_type<tc>, window_params = [{transform_indices = @transform_0, window_bounds = array<i64: 8, 16>}, {pipeline_mode = #tpu.pipeline_mode<synchronous>, transform_indices = @transform_1, window_bounds = array<i64: 16, 64>}, {pipeline_mode = #tpu.pipeline_mode<synchronous>, transform_indices = @transform_2, window_bounds = array<i64: 1, 64>}, {pipeline_mode = #tpu.pipeline_mode<synchronous>, transform_indices = @transform_3, window_bounds = array<i64: 64, 64>}, {pipeline_mode = #tpu.pipeline_mode<synchronous>, transform_indices = @transform_4, window_bounds = array<i64: 1, 64>}, {pipeline_mode = #tpu.pipeline_mode<synchronous>, transform_indices = @transform_5, window_bounds = array<i64: 64, 32>}, {pipeline_mode = #tpu.pipeline_mode<synchronous>, transform_indices = @transform_6, window_bounds = array<i64: 1, 32>}, {pipeline_mode = #tpu.pipeline_mode<synchronous>, transform_indices = @transform_7, window_bounds = array<i64: 32, 4>}, {pipeline_mode = #tpu.pipeline_mode<synchronous>, transform_indices = @transform_8, window_bounds = array<i64: 1, 4>}, {pipeline_mode = #tpu.pipeline_mode<synchronous>, transform_indices = @transform_9, window_bounds = array<i64: 1, 4>}, {pipeline_mode = #tpu.pipeline_mode<synchronous>, transform_indices = @transform_10, window_bounds = array<i64: 1, 4>}, {transform_indices = @transform_11, window_bounds = array<i64: 8, 4>}]} {
    %c0 = arith.constant 0 : index
    %c0_0 = arith.constant 0 : index
    %0 = vector.load %arg1[%c0, %c0_0] : memref<8x16xf32, #tpu.memory_space<vmem>>, vector<8x16xf32>
    %1 = arith.truncf %0 : vector<8x16xf32> to vector<8x16xbf16>
    %c0_1 = arith.constant 0 : index
    %c0_2 = arith.constant 0 : index
    %2 = vector.load %arg2[%c0_1, %c0_2] : memref<16x64xbf16, #tpu.memory_space<vmem>>, vector<16x64xbf16>
    %cst = arith.constant dense<0.000000e+00> : vector<8x64xf32>
    %3 = tpu.matmul %1, %2, %cst {dimension_numbers = #tpu.dot_dimension_numbers<[1], [0], [0], [1], [0, 0, 1, 1], [], []>} : vector<8x16xbf16>, vector<16x64xbf16>, vector<8x64xf32> -> vector<8x64xf32>
    %c0_3 = arith.constant 0 : index
    %c0_4 = arith.constant 0 : index
    %4 = vector.load %arg3[%c0_3, %c0_4] : memref<1x64xf32, #tpu.memory_space<vmem>>, vector<1x64xf32>
    %5 = vector.broadcast %4 : vector<1x64xf32> to vector<8x64xf32>
    %6 = arith.addf %3, %5 : vector<8x64xf32>
    %cst_5 = arith.constant 0.000000e+00 : f32
    %7 = vector.broadcast %cst_5 : f32 to vector<8x64xf32>
    %8 = arith.maximumf %6, %7 : vector<8x64xf32>
    %9 = arith.truncf %8 : vector<8x64xf32> to vector<8x64xbf16>
    %c0_6 = arith.constant 0 : index
    %c0_7 = arith.constant 0 : index
    %10 = vector.load %arg4[%c0_6, %c0_7] : memref<64x64xbf16, #tpu.memory_space<vmem>>, vector<64x64xbf16>
    %cst_8 = arith.constant dense<0.000000e+00> : vector<8x64xf32>
    %11 = tpu.matmul %9, %10, %cst_8 {dimension_numbers = #tpu.dot_dimension_numbers<[1], [0], [0], [1], [0, 0, 1, 1], [], []>} : vector<8x64xbf16>, vector<64x64xbf16>, vector<8x64xf32> -> vector<8x64xf32>
    %c0_9 = arith.constant 0 : index
    %c0_10 = arith.constant 0 : index
    %12 = vector.load %arg5[%c0_9, %c0_10] : memref<1x64xf32, #tpu.memory_space<vmem>>, vector<1x64xf32>
    %13 = vector.broadcast %12 : vector<1x64xf32> to vector<8x64xf32>
    %14 = arith.addf %11, %13 : vector<8x64xf32>
    %cst_11 = arith.constant 0.000000e+00 : f32
    %15 = vector.broadcast %cst_11 : f32 to vector<8x64xf32>
    %16 = arith.maximumf %14, %15 : vector<8x64xf32>
    %17 = arith.truncf %16 : vector<8x64xf32> to vector<8x64xbf16>
    %c0_12 = arith.constant 0 : index
    %c0_13 = arith.constant 0 : index
    %18 = vector.load %arg6[%c0_12, %c0_13] : memref<64x32xbf16, #tpu.memory_space<vmem>>, vector<64x32xbf16>
    %cst_14 = arith.constant dense<0.000000e+00> : vector<8x32xf32>
    %19 = tpu.matmul %17, %18, %cst_14 {dimension_numbers = #tpu.dot_dimension_numbers<[1], [0], [0], [1], [0, 0, 1, 1], [], []>} : vector<8x64xbf16>, vector<64x32xbf16>, vector<8x32xf32> -> vector<8x32xf32>
    %c0_15 = arith.constant 0 : index
    %c0_16 = arith.constant 0 : index
    %20 = vector.load %arg7[%c0_15, %c0_16] : memref<1x32xf32, #tpu.memory_space<vmem>>, vector<1x32xf32>
    %21 = vector.broadcast %20 : vector<1x32xf32> to vector<8x32xf32>
    %22 = arith.addf %19, %21 : vector<8x32xf32>
    %cst_17 = arith.constant 0.000000e+00 : f32
    %23 = vector.broadcast %cst_17 : f32 to vector<8x32xf32>
    %24 = arith.maximumf %22, %23 : vector<8x32xf32>
    %25 = arith.truncf %24 : vector<8x32xf32> to vector<8x32xbf16>
    %c0_18 = arith.constant 0 : index
    %c0_19 = arith.constant 0 : index
    %26 = vector.load %arg8[%c0_18, %c0_19] : memref<32x4xbf16, #tpu.memory_space<vmem>>, vector<32x4xbf16>
    %cst_20 = arith.constant dense<0.000000e+00> : vector<8x4xf32>
    %27 = tpu.matmul %25, %26, %cst_20 {dimension_numbers = #tpu.dot_dimension_numbers<[1], [0], [0], [1], [0, 0, 1, 1], [], []>} : vector<8x32xbf16>, vector<32x4xbf16>, vector<8x4xf32> -> vector<8x4xf32>
    %c0_21 = arith.constant 0 : index
    %c0_22 = arith.constant 0 : index
    %28 = vector.load %arg9[%c0_21, %c0_22] : memref<1x4xf32, #tpu.memory_space<vmem>>, vector<1x4xf32>
    %29 = vector.broadcast %28 : vector<1x4xf32> to vector<8x4xf32>
    %30 = arith.addf %27, %29 : vector<8x4xf32>
    %cst_23 = arith.constant dense<0.000000e+00> : vector<8xf32>
    %31 = vector.multi_reduction <add>, %30, %cst_23 [1] : vector<8x4xf32> to vector<8xf32>
    %32 = vector.shape_cast %31 : vector<8xf32> to vector<8x1xf32>
    %cst_24 = arith.constant 4.000000e+00 : f32
    %33 = vector.broadcast %cst_24 : f32 to vector<8x1xf32>
    %34 = arith.divf %32, %33 : vector<8x1xf32>
    %35 = vector.broadcast %34 : vector<8x1xf32> to vector<8x4xf32>
    %36 = arith.subf %30, %35 : vector<8x4xf32>
    %37 = arith.mulf %36, %36 : vector<8x4xf32>
    %cst_25 = arith.constant dense<0.000000e+00> : vector<8xf32>
    %38 = vector.multi_reduction <add>, %37, %cst_25 [1] : vector<8x4xf32> to vector<8xf32>
    %39 = vector.shape_cast %38 : vector<8xf32> to vector<8x1xf32>
    %cst_26 = arith.constant 4.000000e+00 : f32
    %40 = vector.broadcast %cst_26 : f32 to vector<8x1xf32>
    %41 = arith.divf %39, %40 : vector<8x1xf32>
    %cst_27 = arith.constant 9.99999974E-6 : f32
    %42 = vector.broadcast %cst_27 : f32 to vector<8x1xf32>
    %43 = arith.addf %41, %42 : vector<8x1xf32>
    %44 = math.rsqrt %43 : vector<8x1xf32>
    %45 = vector.broadcast %44 : vector<8x1xf32> to vector<8x4xf32>
    %46 = arith.mulf %36, %45 : vector<8x4xf32>
    %c0_28 = arith.constant 0 : index
    %c0_29 = arith.constant 0 : index
    %47 = vector.load %arg10[%c0_28, %c0_29] : memref<1x4xf32, #tpu.memory_space<vmem>>, vector<1x4xf32>
    %48 = vector.broadcast %47 : vector<1x4xf32> to vector<8x4xf32>
    %49 = arith.mulf %46, %48 : vector<8x4xf32>
    %c0_30 = arith.constant 0 : index
    %c0_31 = arith.constant 0 : index
    %50 = vector.load %arg11[%c0_30, %c0_31] : memref<1x4xf32, #tpu.memory_space<vmem>>, vector<1x4xf32>
    %51 = vector.broadcast %50 : vector<1x4xf32> to vector<8x4xf32>
    %52 = arith.addf %49, %51 : vector<8x4xf32>
    %53 = math.tanh %52 : vector<8x4xf32>
    %cst_32 = arith.constant 1.000000e+00 : f32
    %54 = vector.broadcast %cst_32 : f32 to vector<8x4xf32>
    %55 = arith.addf %53, %54 : vector<8x4xf32>
    %cst_33 = arith.constant 5.000000e-01 : f32
    %56 = vector.broadcast %cst_33 : f32 to vector<8x4xf32>
    %57 = arith.mulf %55, %56 : vector<8x4xf32>
    %c0_34 = arith.constant 0 : index
    %c0_35 = arith.constant 0 : index
    %58 = vector.load %arg12[%c0_34, %c0_35] : memref<8x4xf32, #tpu.memory_space<vmem>>, vector<8x4xf32>
    tpu.vector_store %arg12[%c0_34, %c0_35], %57 {strides = array<i32>} : memref<8x4xf32, #tpu.memory_space<vmem>>, vector<8x4xf32>,
    return
  }
  func.func @transform_0(%arg0: i32) -> (i32, i32) {
    %c0_i32 = arith.constant 0 : i32
    %c0_i32_0 = arith.constant 0 : i32
    return %arg0, %c0_i32 : i32, i32
  }
  func.func @transform_1(%arg0: i32) -> (i32, i32) {
    %c0_i32 = arith.constant 0 : i32
    %c0_i32_0 = arith.constant 0 : i32
    %c0_i32_1 = arith.constant 0 : i32
    return %c0_i32, %c0_i32_0 : i32, i32
  }
  func.func @transform_2(%arg0: i32) -> (i32, i32) {
    %c0_i32 = arith.constant 0 : i32
    %c0_i32_0 = arith.constant 0 : i32
    %c0_i32_1 = arith.constant 0 : i32
    return %c0_i32, %c0_i32_0 : i32, i32
  }
  func.func @transform_3(%arg0: i32) -> (i32, i32) {
    %c0_i32 = arith.constant 0 : i32
    %c0_i32_0 = arith.constant 0 : i32
    %c0_i32_1 = arith.constant 0 : i32
    return %c0_i32, %c0_i32_0 : i32, i32
  }
  func.func @transform_4(%arg0: i32) -> (i32, i32) {
    %c0_i32 = arith.constant 0 : i32
    %c0_i32_0 = arith.constant 0 : i32
    %c0_i32_1 = arith.constant 0 : i32
    return %c0_i32, %c0_i32_0 : i32, i32
  }
  func.func @transform_5(%arg0: i32) -> (i32, i32) {
    %c0_i32 = arith.constant 0 : i32
    %c0_i32_0 = arith.constant 0 : i32
    %c0_i32_1 = arith.constant 0 : i32
    return %c0_i32, %c0_i32_0 : i32, i32
  }
  func.func @transform_6(%arg0: i32) -> (i32, i32) {
    %c0_i32 = arith.constant 0 : i32
    %c0_i32_0 = arith.constant 0 : i32
    %c0_i32_1 = arith.constant 0 : i32
    return %c0_i32, %c0_i32_0 : i32, i32
  }
  func.func @transform_7(%arg0: i32) -> (i32, i32) {
    %c0_i32 = arith.constant 0 : i32
    %c0_i32_0 = arith.constant 0 : i32
    %c0_i32_1 = arith.constant 0 : i32
    return %c0_i32, %c0_i32_0 : i32, i32
  }
  func.func @transform_8(%arg0: i32) -> (i32, i32) {
    %c0_i32 = arith.constant 0 : i32
    %c0_i32_0 = arith.constant 0 : i32
    %c0_i32_1 = arith.constant 0 : i32
    return %c0_i32, %c0_i32_0 : i32, i32
  }
  func.func @transform_9(%arg0: i32) -> (i32, i32) {
    %c0_i32 = arith.constant 0 : i32
    %c0_i32_0 = arith.constant 0 : i32
    %c0_i32_1 = arith.constant 0 : i32
    return %c0_i32, %c0_i32_0 : i32, i32
  }
  func.func @transform_10(%arg0: i32) -> (i32, i32) {
    %c0_i32 = arith.constant 0 : i32
    %c0_i32_0 = arith.constant 0 : i32
    %c0_i32_1 = arith.constant 0 : i32
    return %c0_i32, %c0_i32_0 : i32, i32
  }
  func.func @transform_11(%arg0: i32) -> (i32, i32) {
    %c0_i32 = arith.constant 0 : i32
    %c0_i32_0 = arith.constant 0 : i32
    return %arg0, %c0_i32 : i32, i32
  }
}

</mosaic_0001>

<llo_original>
// kernel: tpu_custom_call.1
$region0: #{tpu_custom_call.1}
  #allocation0 [shape = 'u32[]', space=smem, size = 0x4, offset = 0x4, fixed_abs, tag = 'smem constant byte address 0x4 - core index']
  #allocation1 [shape = 'u32[144,128]{1,0:T(1,128)}', space=vmem, size = 0x12000, scoped, tag = 'internal scratch']
  %s0 = inlined_call_operand.vmem [shape: f32[32,16], index: 0, kind: input, shape index: {}]
  %s1 = inlined_call_operand.vmem [shape: bf16[16,64], index: 1, kind: input, shape index: {}]
  %s2 = inlined_call_operand.vmem [shape: f32[1,64], index: 2, kind: input, shape index: {}]
  %s3 = inlined_call_operand.vmem [shape: bf16[64,64], index: 3, kind: input, shape index: {}]
  %s4 = inlined_call_operand.vmem [shape: f32[1,64], index: 4, kind: input, shape index: {}]
  %s5 = inlined_call_operand.vmem [shape: bf16[64,32], index: 5, kind: input, shape index: {}]
  %s6 = inlined_call_operand.vmem [shape: f32[1,32], index: 6, kind: input, shape index: {}]
  %s7 = inlined_call_operand.vmem [shape: bf16[32,4], index: 7, kind: input, shape index: {}]
  %s8 = inlined_call_operand.vmem [shape: f32[1,4], index: 8, kind: input, shape index: {}]
  %s9 = inlined_call_operand.vmem [shape: f32[1,4], index: 9, kind: input, shape index: {}]
  %s10 = inlined_call_operand.vmem [shape: f32[1,4], index: 10, kind: input, shape index: {}]
  %s11 = inlined_call_operand.vmem [shape: f32[32,4], index: 11, kind: output, shape index: {}]
  %s12 = sld [smem:[#allocation0]]
  $region77: #{tpu_custom_call.1} parent=0
    _
  %s14 = ssub.s32 1, %s12
  %s15 = scalar_select 0, %s14, %s12
  loop: start=0, step=1, limit=6
  $region2: #{tpu_custom_call.1} parent=0 // loop_pre_header
    _
  $region3: #{tpu_custom_call.1} parent=0 // loop_header
    %s17 = sphi 0, %s21
    %p18 = scmp.ge.s32.totalorder %s17, 6
    %s27 = sphi 0, %s29
    %s30 = sphi 0, %s27
    %s31 = sphi 0, %s30
    %s47 = sphi 0, %s31
    %s51 = sphi 0, %s51
    %s53 = sphi 0, %s51
    %s54 = sphi 0, %s53
    %s68 = sphi 0, %s54
    %s72 = sphi 0, %s72
    %s74 = sphi 0, %s72
    %s75 = sphi 0, %s74
    %s89 = sphi 0, %s75
    %s93 = sphi 0, %s93
    %s95 = sphi 0, %s93
    %s96 = sphi 0, %s95
    %s110 = sphi 0, %s96
    %s114 = sphi 0, %s114
    %s116 = sphi 0, %s114
    %s117 = sphi 0, %s116
    %s131 = sphi 0, %s117
    %s135 = sphi 0, %s135
    %s137 = sphi 0, %s135
    %s138 = sphi 0, %s137
    %s152 = sphi 0, %s138
    %s156 = sphi 0, %s156
    %s158 = sphi 0, %s156
    %s159 = sphi 0, %s158
    %s173 = sphi 0, %s159
    %s177 = sphi 0, %s177
    %s179 = sphi 0, %s177
    %s180 = sphi 0, %s179
    %s194 = sphi 0, %s180
    %s198 = sphi 0, %s198
    %s200 = sphi 0, %s198
    %s201 = sphi 0, %s200
    %s215 = sphi 0, %s201
    %s219 = sphi 0, %s219
    %s221 = sphi 0, %s219
    %s222 = sphi 0, %s221
    %s236 = sphi 0, %s222
    %s240 = sphi 0, %s240
    %s242 = sphi 0, %s240
    %s243 = sphi 0, %s242
    %s257 = sphi 0, %s243
    %s263 = sphi 0, %s265
    %s266 = sphi 0, %s263
    %s267 = sphi 0, %s266
    %s283 = sphi 0, %s267
  $region4: #{tpu_custom_call.1} parent=0 // loop_header_branch
    %20 = sbr.rel (%p18) target = $region8
  $region5: #{tpu_custom_call.1} parent=0 // loop_body
    %s22 = ssub.s32 %s17, 1
    %s23 = ssub.s32 %s17, 2
    %s24 = sadd.s32 %s17, 1
    %s25 = ssub.s32 %s17, %s24
    %p26 = scmp.eq.s32.totalorder %s25, 0
    %s28 = sadd.s32 %s27, 1
    %s29 = scalar_select %p26, %s27, %s28
    %p32 = pneg %p26
    %p33 = scmp.eq.s32.totalorder %s17, 3
    %p34 = por %p32, %p33
    %p35 = scmp.ne.s32.totalorder %s27, %s30
    %p36 = scmp.eq.s32.totalorder %s17, 0
    %p37 = por %p35, %p36
    %p38 = scmp.ne.s32.totalorder %s27, %s30
    %p39 = scmp.eq.s32.totalorder %s22, 3
    %p40 = por %p38, %p39
    %p41 = scmp.ne.s32.totalorder %s30, %s31
    %p42 = scmp.eq.s32.totalorder %s22, 0
    %p43 = por %p41, %p42
    %p44 = scmp.ne.s32.totalorder %s30, %s31
    %p45 = scmp.eq.s32.totalorder %s23, 3
    %p46 = por %p44, %p45
    %p48 = scmp.ne.s32.totalorder %s31, %s47
    %p49 = scmp.eq.s32.totalorder %s23, 0
    %p50 = por %p48, %p49
    %s52 = sadd.s32 %s51, 1
    %p55 = scmp.eq.s32.totalorder %s17, 3
    %p56 = scmp.ne.s32.totalorder %s51, %s53
    %p57 = scmp.eq.s32.totalorder %s17, 0
    %p58 = por %p56, %p57
    %p59 = scmp.ne.s32.totalorder %s51, %s53
    %p60 = scmp.eq.s32.totalorder %s22, 3
    %p61 = por %p59, %p60
    %p62 = scmp.ne.s32.totalorder %s53, %s54
    %p63 = scmp.eq.s32.totalorder %s22, 0
    %p64 = por %p62, %p63
    %p65 = scmp.ne.s32.totalorder %s53, %s54
    %p66 = scmp.eq.s32.totalorder %s23, 3
    %p67 = por %p65, %p66
    %p69 = scmp.ne.s32.totalorder %s54, %s68
    %p70 = scmp.eq.s32.totalorder %s23, 0
    %p71 = por %p69, %p70
    %s73 = sadd.s32 %s72, 1
    %p76 = scmp.eq.s32.totalorder %s17, 3
    %p77 = scmp.ne.s32.totalorder %s72, %s74
    %p78 = scmp.eq.s32.totalorder %s17, 0
    %p79 = por %p77, %p78
    %p80 = scmp.ne.s32.totalorder %s72, %s74
    %p81 = scmp.eq.s32.totalorder %s22, 3
    %p82 = por %p80, %p81
    %p83 = scmp.ne.s32.totalorder %s74, %s75
    %p84 = scmp.eq.s32.totalorder %s22, 0
    %p85 = por %p83, %p84
    %p86 = scmp.ne.s32.totalorder %s74, %s75
    %p87 = scmp.eq.s32.totalorder %s23, 3
    %p88 = por %p86, %p87
    %p90 = scmp.ne.s32.totalorder %s75, %s89
    %p91 = scmp.eq.s32.totalorder %s23, 0
    %p92 = por %p90, %p91
    %s94 = sadd.s32 %s93, 1
    %p97 = scmp.eq.s32.totalorder %s17, 3
    %p98 = scmp.ne.s32.totalorder %s93, %s95
    %p99 = scmp.eq.s32.totalorder %s17, 0
    %p100 = por %p98, %p99
    %p101 = scmp.ne.s32.totalorder %s93, %s95
    %p102 = scmp.eq.s32.totalorder %s22, 3
    %p103 = por %p101, %p102
    %p104 = scmp.ne.s32.totalorder %s95, %s96
    %p105 = scmp.eq.s32.totalorder %s22, 0
    %p106 = por %p104, %p105
    %p107 = scmp.ne.s32.totalorder %s95, %s96
    %p108 = scmp.eq.s32.totalorder %s23, 3
    %p109 = por %p107, %p108
    %p111 = scmp.ne.s32.totalorder %s96, %s110
    %p112 = scmp.eq.s32.totalorder %s23, 0
    %p113 = por %p111, %p112
    %s115 = sadd.s32 %s114, 1
    %p118 = scmp.eq.s32.totalorder %s17, 3
    %p119 = scmp.ne.s32.totalorder %s114, %s116
    %p120 = scmp.eq.s32.totalorder %s17, 0
    %p121 = por %p119, %p120
    %p122 = scmp.ne.s32.totalorder %s114, %s116
    %p123 = scmp.eq.s32.totalorder %s22, 3
    %p124 = por %p122, %p123
    %p125 = scmp.ne.s32.totalorder %s116, %s117
    %p126 = scmp.eq.s32.totalorder %s22, 0
    %p127 = por %p125, %p126
    %p128 = scmp.ne.s32.totalorder %s116, %s117
    %p129 = scmp.eq.s32.totalorder %s23, 3
    %p130 = por %p128, %p129
    %p132 = scmp.ne.s32.totalorder %s117, %s131
    %p133 = scmp.eq.s32.totalorder %s23, 0
    %p134 = por %p132, %p133
    %s136 = sadd.s32 %s135, 1
    %p139 = scmp.eq.s32.totalorder %s17, 3
    %p140 = scmp.ne.s32.totalorder %s135, %s137
    %p141 = scmp.eq.s32.totalorder %s17, 0
    %p142 = por %p140, %p141
    %p143 = scmp.ne.s32.totalorder %s135, %s137
    %p144 = scmp.eq.s32.totalorder %s22, 3
    %p145 = por %p143, %p144
    %p146 = scmp.ne.s32.totalorder %s137, %s138
    %p147 = scmp.eq.s32.totalorder %s22, 0
    %p148 = por %p146, %p147
    %p149 = scmp.ne.s32.totalorder %s137, %s138
    %p150 = scmp.eq.s32.totalorder %s23, 3
    %p151 = por %p149, %p150
    %p153 = scmp.ne.s32.totalorder %s138, %s152
    %p154 = scmp.eq.s32.totalorder %s23, 0
    %p155 = por %p153, %p154
    %s157 = sadd.s32 %s156, 1
    %p160 = scmp.eq.s32.totalorder %s17, 3
    %p161 = scmp.ne.s32.totalorder %s156, %s158
    %p162 = scmp.eq.s32.totalorder %s17, 0
    %p163 = por %p161, %p162
    %p164 = scmp.ne.s32.totalorder %s156, %s158
    %p165 = scmp.eq.s32.totalorder %s22, 3
    %p166 = por %p164, %p165
    %p167 = scmp.ne.s32.totalorder %s158, %s159
    %p168 = scmp.eq.s32.totalorder %s22, 0
    %p169 = por %p167, %p168
    %p170 = scmp.ne.s32.totalorder %s158, %s159
    %p171 = scmp.eq.s32.totalorder %s23, 3
    %p172 = por %p170, %p171
    %p174 = scmp.ne.s32.totalorder %s159, %s173
    %p175 = scmp.eq.s32.totalorder %s23, 0
    %p176 = por %p174, %p175
    %s178 = sadd.s32 %s177, 1
    %p181 = scmp.eq.s32.totalorder %s17, 3
    %p182 = scmp.ne.s32.totalorder %s177, %s179
    %p183 = scmp.eq.s32.totalorder %s17, 0
    %p184 = por %p182, %p183
    %p185 = scmp.ne.s32.totalorder %s177, %s179
    %p186 = scmp.eq.s32.totalorder %s22, 3
    %p187 = por %p185, %p186
    %p188 = scmp.ne.s32.totalorder %s179, %s180
    %p189 = scmp.eq.s32.totalorder %s22, 0
    %p190 = por %p188, %p189
    %p191 = scmp.ne.s32.totalorder %s179, %s180
    %p192 = scmp.eq.s32.totalorder %s23, 3
    %p193 = por %p191, %p192
    %p195 = scmp.ne.s32.totalorder %s180, %s194
    %p196 = scmp.eq.s32.totalorder %s23, 0
    %p197 = por %p195, %p196
    %s199 = sadd.s32 %s198, 1
    %p202 = scmp.eq.s32.totalorder %s17, 3
    %p203 = scmp.ne.s32.totalorder %s198, %s200
    %p204 = scmp.eq.s32.totalorder %s17, 0
    %p205 = por %p203, %p204
    %p206 = scmp.ne.s32.totalorder %s198, %s200
    %p207 = scmp.eq.s32.totalorder %s22, 3
    %p208 = por %p206, %p207
    %p209 = scmp.ne.s32.totalorder %s200, %s201
    %p210 = scmp.eq.s32.totalorder %s22, 0
    %p211 = por %p209, %p210
    %p212 = scmp.ne.s32.totalorder %s200, %s201
    %p213 = scmp.eq.s32.totalorder %s23, 3
    %p214 = por %p212, %p213
    %p216 = scmp.ne.s32.totalorder %s201, %s215
    %p217 = scmp.eq.s32.totalorder %s23, 0
    %p218 = por %p216, %p217
    %s220 = sadd.s32 %s219, 1
    %p223 = scmp.eq.s32.totalorder %s17, 3
    %p224 = scmp.ne.s32.totalorder %s219, %s221
    %p225 = scmp.eq.s32.totalorder %s17, 0
    %p226 = por %p224, %p225
    %p227 = scmp.ne.s32.totalorder %s219, %s221
    %p228 = scmp.eq.s32.totalorder %s22, 3
    %p229 = por %p227, %p228
    %p230 = scmp.ne.s32.totalorder %s221, %s222
    %p231 = scmp.eq.s32.totalorder %s22, 0
    %p232 = por %p230, %p231
    %p233 = scmp.ne.s32.totalorder %s221, %s222
    %p234 = scmp.eq.s32.totalorder %s23, 3
    %p235 = por %p233, %p234
    %p237 = scmp.ne.s32.totalorder %s222, %s236
    %p238 = scmp.eq.s32.totalorder %s23, 0
    %p239 = por %p237, %p238
    %s241 = sadd.s32 %s240, 1
    %p244 = scmp.eq.s32.totalorder %s17, 3
    %p245 = scmp.ne.s32.totalorder %s240, %s242
    %p246 = scmp.eq.s32.totalorder %s17, 0
    %p247 = por %p245, %p246
    %p248 = scmp.ne.s32.totalorder %s240, %s242
    %p249 = scmp.eq.s32.totalorder %s22, 3
    %p250 = por %p248, %p249
    %p251 = scmp.ne.s32.totalorder %s242, %s243
    %p252 = scmp.eq.s32.totalorder %s22, 0
    %p253 = por %p251, %p252
    %p254 = scmp.ne.s32.totalorder %s242, %s243
    %p255 = scmp.eq.s32.totalorder %s23, 3
    %p256 = por %p254, %p255
    %p258 = scmp.ne.s32.totalorder %s243, %s257
    %p259 = scmp.eq.s32.totalorder %s23, 0
    %p260 = por %p258, %p259
    %s261 = ssub.s32 %s17, %s24
    %p262 = scmp.eq.s32.totalorder %s261, 0
    %s264 = sadd.s32 %s263, 1
    %s265 = scalar_select %p262, %s263, %s264
    %p268 = pneg %p262
    %p269 = scmp.eq.s32.totalorder %s17, 3
    %p270 = por %p268, %p269
    %p271 = scmp.ne.s32.totalorder %s263, %s266
    %p272 = scmp.eq.s32.totalorder %s17, 0
    %p273 = por %p271, %p272
    %p274 = scmp.ne.s32.totalorder %s263, %s266
    %p275 = scmp.eq.s32.totalorder %s22, 3
    %p276 = por %p274, %p275
    %p277 = scmp.ne.s32.totalorder %s266, %s267
    %p278 = scmp.eq.s32.totalorder %s22, 0
    %p279 = por %p277, %p278
    %p280 = scmp.ne.s32.totalorder %s266, %s267
    %p281 = scmp.eq.s32.totalorder %s23, 3
    %p282 = por %p280, %p281
    %p284 = scmp.ne.s32.totalorder %s267, %s283
    %p285 = scmp.eq.s32.totalorder %s23, 0
    %p286 = por %p284, %p285
    %p287 = scmp.le.s32.totalorder 1, %s17
    %p288 = scmp.lt.s32.totalorder %s17, 5
    %p289 = pnand %p287, %p288
    %p290 = pneg %p289
    // Predicated region
    $region9: #{tpu_custom_call.1} parent=5 // pred_check
      _
    $region10: #{tpu_custom_call.1} parent=5 // pred_check_branch
      %292 = sbr.rel (%p289) target = $region12
    $region11: #{tpu_custom_call.1} parent=5 // pred_region
      %s293 = ssub.s32 %s17, 1
      // Predicated region
      $region13: #{tpu_custom_call.1} parent=11 // pred_check
        %p294 = pneg %p64
      $region14: #{tpu_custom_call.1} parent=11 // pred_check_branch
        %296 = sbr.rel (%p294) target = $region16
      $region15: #{tpu_custom_call.1} parent=11 // pred_region
        _
      $region16: #{tpu_custom_call.1} parent=11 // pred_fallthru
        _
      // Predicated region
      $region17: #{tpu_custom_call.1} parent=11 // pred_check
        %p297 = pneg %p85
      $region18: #{tpu_custom_call.1} parent=11 // pred_check_branch
        %299 = sbr.rel (%p297) target = $region20
      $region19: #{tpu_custom_call.1} parent=11 // pred_region
        _
      $region20: #{tpu_custom_call.1} parent=11 // pred_fallthru
        _
      // Predicated region
      $region21: #{tpu_custom_call.1} parent=11 // pred_check
        %p300 = pneg %p106
      $region22: #{tpu_custom_call.1} parent=11 // pred_check_branch
        %302 = sbr.rel (%p300) target = $region24
      $region23: #{tpu_custom_call.1} parent=11 // pred_region
        _
      $region24: #{tpu_custom_call.1} parent=11 // pred_fallthru
        _
      // Predicated region
      $region25: #{tpu_custom_call.1} parent=11 // pred_check
        %p303 = pneg %p127
      $region26: #{tpu_custom_call.1} parent=11 // pred_check_branch
        %305 = sbr.rel (%p303) target = $region28
      $region27: #{tpu_custom_call.1} parent=11 // pred_region
        _
      $region28: #{tpu_custom_call.1} parent=11 // pred_fallthru
        _
      // Predicated region
      $region29: #{tpu_custom_call.1} parent=11 // pred_check
        %p306 = pneg %p148
      $region30: #{tpu_custom_call.1} parent=11 // pred_check_branch
        %308 = sbr.rel (%p306) target = $region32
      $region31: #{tpu_custom_call.1} parent=11 // pred_region
        _
      $region32: #{tpu_custom_call.1} parent=11 // pred_fallthru
        _
      // Predicated region
      $region33: #{tpu_custom_call.1} parent=11 // pred_check
        %p309 = pneg %p169
      $region34: #{tpu_custom_call.1} parent=11 // pred_check_branch
        %311 = sbr.rel (%p309) target = $region36
      $region35: #{tpu_custom_call.1} parent=11 // pred_region
        _
      $region36: #{tpu_custom_call.1} parent=11 // pred_fallthru
        _
      // Predicated region
      $region37: #{tpu_custom_call.1} parent=11 // pred_check
        %p312 = pneg %p190
      $region38: #{tpu_custom_call.1} parent=11 // pred_check_branch
        %314 = sbr.rel (%p312) target = $region40
      $region39: #{tpu_custom_call.1} parent=11 // pred_region
        _
      $region40: #{tpu_custom_call.1} parent=11 // pred_fallthru
        _
      // Predicated region
      $region41: #{tpu_custom_call.1} parent=11 // pred_check
        %p315 = pneg %p211
      $region42: #{tpu_custom_call.1} parent=11 // pred_check_branch
        %317 = sbr.rel (%p315) target = $region44
      $region43: #{tpu_custom_call.1} parent=11 // pred_region
        _
      $region44: #{tpu_custom_call.1} parent=11 // pred_fallthru
        _
      // Predicated region
      $region45: #{tpu_custom_call.1} parent=11 // pred_check
        %p318 = pneg %p232
      $region46: #{tpu_custom_call.1} parent=11 // pred_check_branch
        %320 = sbr.rel (%p318) target = $region48
      $region47: #{tpu_custom_call.1} parent=11 // pred_region
        _
      $region48: #{tpu_custom_call.1} parent=11 // pred_fallthru
        _
      // Predicated region
      $region49: #{tpu_custom_call.1} parent=11 // pred_check
        %p321 = pneg %p253
      $region50: #{tpu_custom_call.1} parent=11 // pred_check_branch
        %323 = sbr.rel (%p321) target = $region52
      $region51: #{tpu_custom_call.1} parent=11 // pred_region
        _
      $region52: #{tpu_custom_call.1} parent=11 // pred_fallthru
        _
    $region12: #{tpu_custom_call.1} parent=5 // pred_fallthru
      _
    %p324 = scmp.lt.s32.totalorder %s17, 4
    // Predicated region
    $region53: #{tpu_custom_call.1} parent=5 // pred_check
      %p325 = pneg %p324
    $region54: #{tpu_custom_call.1} parent=5 // pred_check_branch
      %327 = sbr.rel (%p325) target = $region56
    $region55: #{tpu_custom_call.1} parent=5 // pred_region
      // Predicated region
      $region57: #{tpu_custom_call.1} parent=55 // pred_check
        %p328 = pneg %p37
      $region58: #{tpu_custom_call.1} parent=55 // pred_check_branch
        %330 = sbr.rel (%p328) target = $region60
      $region59: #{tpu_custom_call.1} parent=55 // pred_region
        %p331 = scmp.lt.s32.totalorder %s17, 3
        %s332 = scalar_select %p331, %s17, 3
        %s333 = smul.addr %s332, 8
        %s334 = scalar_lea.vmem %s0, %s333
      $region60: #{tpu_custom_call.1} parent=55 // pred_fallthru
        _
    $region56: #{tpu_custom_call.1} parent=5 // pred_fallthru
      _
    %p335 = scmp.le.s32.totalorder 1, %s17
    %p336 = scmp.lt.s32.totalorder %s17, 5
    %p337 = pnand %p335, %p336
    %p338 = pneg %p337
    // Predicated region
    $region61: #{tpu_custom_call.1} parent=5 // pred_check
      _
    $region62: #{tpu_custom_call.1} parent=5 // pred_check_branch
      %340 = sbr.rel (%p337) target = $region64
    $region63: #{tpu_custom_call.1} parent=5 // pred_region
      %s341 = ssub.s32 %s17, 1
      %p342 = scmp.lt.s32.totalorder %s22, 3
      %s343 = scalar_select %p342, %s22, 3
      %s344 = smul.addr %s343, 8
      %s345 = scalar_lea.vmem %s0, %s344
      %p346 = pneg %p43
      %p347 = pneg %p40
      %p348 = pneg %p64
      %p349 = pneg %p61
      %p350 = pneg %p85
      %p351 = pneg %p82
      %p352 = pneg %p106
      %p353 = pneg %p103
      %p354 = pneg %p127
      %p355 = pneg %p124
      %p356 = pneg %p148
      %p357 = pneg %p145
      %p358 = pneg %p169
      %p359 = pneg %p166
      %p360 = pneg %p190
      %p361 = pneg %p187
      %p362 = pneg %p211
      %p363 = pneg %p208
      %p364 = pneg %p232
      %p365 = pneg %p229
      %p366 = pneg %p253
      %p367 = pneg %p250
      %p368 = pneg %p279
      %p369 = pneg %p276
      %p370 = scmp.lt.s32.totalorder %s22, 3
      %s371 = scalar_select %p370, %s22, 3
      %s372 = smul.addr %s371, 8
      %s373 = scalar_lea.vmem %s11, %s372
      %p374 = scmp.lt.s32.totalorder %s22, 3
      %s375 = scalar_select %p374, %s22, 3
      %s376 = smul.addr %s375, 8
      %s377 = scalar_lea.vmem %s0, %s376
      %p378 = scmp.lt.s32.totalorder %s22, 3
      %s379 = scalar_select %p378, %s22, 3
      %s380 = smul.addr %s379, 8
      %s381 = scalar_lea.vmem %s11, %s380
      %v383 = vld [vmem:[%s377] sm:$0xff]
      %v384 = vpack.c.bf16 %v383, %v383
      %v385 = vld [vmem:[%s1] sm:$0xf]
      %v386 = vld [vmem:[%s1 + $0x4] sm:$0xf]
      %v387 = vld [vmem:[%s2] sm:$0x1]
      %v389 = vlaneseq
      %v390 = vshrl.u32 %v389, 7
      %v391 = vsub.s32 0, %v390
      %v392 = vrot.slane %v387, %v391
      %v396 = vunpack.c.l.b16 %v385
      %v397 = vunpack.c.l.b16 %v386
      %v398 = vpack.c.b16 %v397, %v396
      %vm400 = vcmask 130048
      %v402 = vsel %vm400, %v384, 0
      %404 = vmatprep.subr.bf16.mxu0 0
      %405 = vmatpush1.bf16.msra.mxu0 %v398
      %406 = vmatprep.subr.bf16.mxu0 0
      %407 = vmatpush1.bf16.msra.mxu0 0
      %408 = vmatprep.subr.bf16.mxu0 0
      %409 = vmatpush1.bf16.msra.mxu0 0
      %410 = vmatprep.subr.bf16.mxu0 0
      %411 = vmatpush1.bf16.msra.mxu0 0
      %412 = vmatprep.subr.bf16.mxu0 0
      %413 = vmatpush1.bf16.msra.mxu0 0
      %414 = vmatprep.subr.bf16.mxu0 0
      %415 = vmatpush1.bf16.msra.mxu0 0
      %416 = vmatprep.subr.bf16.mxu0 0
      %417 = vmatpush1.bf16.msra.mxu0 0
      %418 = vmatprep.subr.bf16.mxu0 0
      %419 = vmatpush1.bf16.msra.mxu0 0
      %420 = vmatprep.subr.bf16.mxu0 0
      %421 = vmatpush1.bf16.msra.mxu0 0
      %422 = vmatprep.subr.bf16.mxu0 0
      %423 = vmatpush1.bf16.msra.mxu0 0
      %424 = vmatprep.subr.bf16.mxu0 0
      %425 = vmatpush1.bf16.msra.mxu0 0
      %426 = vmatprep.subr.bf16.mxu0 0
      %427 = vmatpush1.bf16.msra.mxu0 0
      %428 = vmatprep.subr.bf16.mxu0 0
      %429 = vmatpush1.bf16.msra.mxu0 0
      %430 = vmatprep.subr.bf16.mxu0 0
      %431 = vmatpush1.bf16.msra.mxu0 0
      %432 = vmatprep.subr.bf16.mxu0 0
      %433 = vmatpush1.bf16.msra.mxu0 0
      %434 = vmatprep.subr.bf16.mxu0 0
      %435 = vmatpush1.bf16.msra.mxu0 0
      %436 = vmatprep.mubr.bf16.mxu0 0
      %437 = vmatmul.mubr.bf16.gmra.mrb[0].mxu0 %v402
      %v438 = vpop.f32.mrb[0].mxu0
      %v439 = vadd.f32 %v392, %v438
      %v440 = vpop.f32.mrb[0].mxu0
      %v441 = vpop.f32.mrb[0].mxu0
      %v442 = vpop.f32.mrb[0].mxu0
      %443 = vdwg.mxu0
      %v444 = vmax.f32 %v439, 0.0
      %v445 = vpack.c.bf16 %v444, %v444
      %v446 = vld [vmem:[%s3] sm:$0xf]
      %v447 = vld [vmem:[%s3 + $0x4] sm:$0xf]
      %v448 = vld [vmem:[%s3 + $0x8] sm:$0xf]
      %v449 = vld [vmem:[%s3 + $0xc] sm:$0xf]
      %v450 = vld [vmem:[%s3 + $0x10] sm:$0xf]
      %v451 = vld [vmem:[%s3 + $0x14] sm:$0xf]
      %v452 = vld [vmem:[%s3 + $0x18] sm:$0xf]
      %v453 = vld [vmem:[%s3 + $0x1c] sm:$0xf]
      %v454 = vld [vmem:[%s4] sm:$0x1]
      %v456 = vlaneseq
      %v457 = vshrl.u32 %v456, 7
      %v458 = vsub.s32 0, %v457
      %v459 = vrot.slane %v454, %v458
      %v469 = vunpack.c.l.b16 %v446
      %v470 = vunpack.c.l.b16 %v447
      %v471 = vunpack.c.l.b16 %v448
      %v472 = vunpack.c.l.b16 %v449
      %v473 = vunpack.c.l.b16 %v450
      %v474 = vunpack.c.l.b16 %v451
      %v475 = vunpack.c.l.b16 %v452
      %v476 = vunpack.c.l.b16 %v453
      %v477 = vpack.c.b16 %v470, %v469
      %v478 = vpack.c.b16 %v472, %v471
      %v479 = vpack.c.b16 %v474, %v473
      %v480 = vpack.c.b16 %v476, %v475
      %vm485 = vcmask 523264
      %v487 = vsel %vm485, %v445, 0
      %489 = vmatprep.subr.bf16.mxu0 0
      %490 = vmatpush1.bf16.msra.mxu0 %v477
      %491 = vmatprep.subr.bf16.mxu0 0
      %492 = vmatpush1.bf16.msra.mxu0 %v478
      %493 = vmatprep.subr.bf16.mxu0 0
      %494 = vmatpush1.bf16.msra.mxu0 %v479
      %495 = vmatprep.subr.bf16.mxu0 0
      %496 = vmatpush1.bf16.msra.mxu0 %v480
      %497 = vmatprep.subr.bf16.mxu0 0
      %498 = vmatpush1.bf16.msra.mxu0 0
      %499 = vmatprep.subr.bf16.mxu0 0
      %500 = vmatpush1.bf16.msra.mxu0 0
      %501 = vmatprep.subr.bf16.mxu0 0
      %502 = vmatpush1.bf16.msra.mxu0 0
      %503 = vmatprep.subr.bf16.mxu0 0
      %504 = vmatpush1.bf16.msra.mxu0 0
      %505 = vmatprep.subr.bf16.mxu0 0
      %506 = vmatpush1.bf16.msra.mxu0 0
      %507 = vmatprep.subr.bf16.mxu0 0
      %508 = vmatpush1.bf16.msra.mxu0 0
      %509 = vmatprep.subr.bf16.mxu0 0
      %510 = vmatpush1.bf16.msra.mxu0 0
      %511 = vmatprep.subr.bf16.mxu0 0
      %512 = vmatpush1.bf16.msra.mxu0 0
      %513 = vmatprep.subr.bf16.mxu0 0
      %514 = vmatpush1.bf16.msra.mxu0 0
      %515 = vmatprep.subr.bf16.mxu0 0
      %516 = vmatpush1.bf16.msra.mxu0 0
      %517 = vmatprep.subr.bf16.mxu0 0
      %518 = vmatpush1.bf16.msra.mxu0 0
      %519 = vmatprep.subr.bf16.mxu0 0
      %520 = vmatpush1.bf16.msra.mxu0 0
      %521 = vmatprep.mubr.bf16.mxu0 0
      %522 = vmatmul.mubr.bf16.gmra.mrb[0].mxu0 %v487
      %v523 = vpop.f32.mrb[0].mxu0
      %v524 = vadd.f32 %v459, %v523
      %v525 = vpop.f32.mrb[0].mxu0
      %v526 = vpop.f32.mrb[0].mxu0
      %v527 = vpop.f32.mrb[0].mxu0
      %528 = vdwg.mxu0
      %v529 = vmax.f32 %v524, 0.0
      %v530 = vpack.c.bf16 %v529, %v529
      %v531 = vld [vmem:[%s5] sm:$0xf]
      %v532 = vld [vmem:[%s5 + $0x4] sm:$0xf]
      %v533 = vld [vmem:[%s5 + $0x8] sm:$0xf]
      %v534 = vld [vmem:[%s5 + $0xc] sm:$0xf]
      %v535 = vld [vmem:[%s5 + $0x10] sm:$0xf]
      %v536 = vld [vmem:[%s5 + $0x14] sm:$0xf]
      %v537 = vld [vmem:[%s5 + $0x18] sm:$0xf]
      %v538 = vld [vmem:[%s5 + $0x1c] sm:$0xf]
      %v539 = vld [vmem:[%s6] sm:$0x1]
      %v541 = vlaneseq
      %v542 = vshrl.u32 %v541, 7
      %v543 = vsub.s32 0, %v542
      %v544 = vrot.slane %v539, %v543
      %v554 = vunpack.c.l.b16 %v531
      %v555 = vunpack.c.l.b16 %v532
      %v556 = vunpack.c.l.b16 %v533
      %v557 = vunpack.c.l.b16 %v534
      %v558 = vunpack.c.l.b16 %v535
      %v559 = vunpack.c.l.b16 %v536
      %v560 = vunpack.c.l.b16 %v537
      %v561 = vunpack.c.l.b16 %v538
      %v562 = vpack.c.b16 %v555, %v554
      %v563 = vpack.c.b16 %v557, %v556
      %v564 = vpack.c.b16 %v559, %v558
      %v565 = vpack.c.b16 %v561, %v560
      %v571 = vsel %vm485, %v530, 0
      %573 = vmatprep.subr.bf16.mxu0 0
      %574 = vmatpush1.bf16.msra.mxu0 %v562
      %575 = vmatprep.subr.bf16.mxu0 0
      %576 = vmatpush1.bf16.msra.mxu0 %v563
      %577 = vmatprep.subr.bf16.mxu0 0
      %578 = vmatpush1.bf16.msra.mxu0 %v564
      %579 = vmatprep.subr.bf16.mxu0 0
      %580 = vmatpush1.bf16.msra.mxu0 %v565
      %581 = vmatprep.subr.bf16.mxu0 0
      %582 = vmatpush1.bf16.msra.mxu0 0
      %583 = vmatprep.subr.bf16.mxu0 0
      %584 = vmatpush1.bf16.msra.mxu0 0
      %585 = vmatprep.subr.bf16.mxu0 0
      %586 = vmatpush1.bf16.msra.mxu0 0
      %587 = vmatprep.subr.bf16.mxu0 0
      %588 = vmatpush1.bf16.msra.mxu0 0
      %589 = vmatprep.subr.bf16.mxu0 0
      %590 = vmatpush1.bf16.msra.mxu0 0
      %591 = vmatprep.subr.bf16.mxu0 0
      %592 = vmatpush1.bf16.msra.mxu0 0
      %593 = vmatprep.subr.bf16.mxu0 0
      %594 = vmatpush1.bf16.msra.mxu0 0
      %595 = vmatprep.subr.bf16.mxu0 0
      %596 = vmatpush1.bf16.msra.mxu0 0
      %597 = vmatprep.subr.bf16.mxu0 0
      %598 = vmatpush1.bf16.msra.mxu0 0
      %599 = vmatprep.subr.bf16.mxu0 0
      %600 = vmatpush1.bf16.msra.mxu0 0
      %601 = vmatprep.subr.bf16.mxu0 0
      %602 = vmatpush1.bf16.msra.mxu0 0
      %603 = vmatprep.subr.bf16.mxu0 0
      %604 = vmatpush1.bf16.msra.mxu0 0
      %605 = vmatprep.mubr.bf16.mxu0 0
      %606 = vmatmul.mubr.bf16.gmra.mrb[0].mxu0 %v571
      %v607 = vpop.f32.mrb[0].mxu0
      %v608 = vadd.f32 %v544, %v607
      %v609 = vpop.f32.mrb[0].mxu0
      %v610 = vpop.f32.mrb[0].mxu0
      %v611 = vpop.f32.mrb[0].mxu0
      %612 = vdwg.mxu0
      %v613 = vmax.f32 %v608, 0.0
      %v614 = vpack.c.bf16 %v613, %v613
      %v615 = vld [vmem:[%s7] sm:$0xf]
      %v616 = vld [vmem:[%s7 + $0x4] sm:$0xf]
      %v617 = vld [vmem:[%s7 + $0x8] sm:$0xf]
      %v618 = vld [vmem:[%s7 + $0xc] sm:$0xf]
      %v619 = vld [vmem:[%s8] sm:$0x1]
      %v621 = vlaneseq
      %v622 = vshrl.u32 %v621, 7
      %v623 = vsub.s32 0, %v622
      %v624 = vrot.slane %v619, %v623
      %v630 = vunpack.c.l.b16 %v615
      %v631 = vunpack.c.l.b16 %v616
      %v632 = vunpack.c.l.b16 %v617
      %v633 = vunpack.c.l.b16 %v618
      %v634 = vpack.c.b16 %v631, %v630
      %v635 = vpack.c.b16 %v633, %v632
      %vm638 = vcmask 261120
      %v640 = vsel %vm638, %v614, 0
      %642 = vmatprep.subr.bf16.mxu0 0
      %643 = vmatpush1.bf16.msra.mxu0 %v634
      %644 = vmatprep.subr.bf16.mxu0 0
      %645 = vmatpush1.bf16.msra.mxu0 %v635
      %646 = vmatprep.subr.bf16.mxu0 0
      %647 = vmatpush1.bf16.msra.mxu0 0
      %648 = vmatprep.subr.bf16.mxu0 0
      %649 = vmatpush1.bf16.msra.mxu0 0
      %650 = vmatprep.subr.bf16.mxu0 0
      %651 = vmatpush1.bf16.msra.mxu0 0
      %652 = vmatprep.subr.bf16.mxu0 0
      %653 = vmatpush1.bf16.msra.mxu0 0
      %654 = vmatprep.subr.bf16.mxu0 0
      %655 = vmatpush1.bf16.msra.mxu0 0
      %656 = vmatprep.subr.bf16.mxu0 0
      %657 = vmatpush1.bf16.msra.mxu0 0
      %658 = vmatprep.subr.bf16.mxu0 0
      %659 = vmatpush1.bf16.msra.mxu0 0
      %660 = vmatprep.subr.bf16.mxu0 0
      %661 = vmatpush1.bf16.msra.mxu0 0
      %662 = vmatprep.subr.bf16.mxu0 0
      %663 = vmatpush1.bf16.msra.mxu0 0
      %664 = vmatprep.subr.bf16.mxu0 0
      %665 = vmatpush1.bf16.msra.mxu0 0
      %666 = vmatprep.subr.bf16.mxu0 0
      %667 = vmatpush1.bf16.msra.mxu0 0
      %668 = vmatprep.subr.bf16.mxu0 0
      %669 = vmatpush1.bf16.msra.mxu0 0
      %670 = vmatprep.subr.bf16.mxu0 0
      %671 = vmatpush1.bf16.msra.mxu0 0
      %672 = vmatprep.subr.bf16.mxu0 0
      %673 = vmatpush1.bf16.msra.mxu0 0
      %674 = vmatprep.mubr.bf16.mxu0 0
      %675 = vmatmul.mubr.bf16.gmra.mrb[0].mxu0 %v640
      %v676 = vpop.f32.mrb[0].mxu0
      %v677 = vadd.f32 %v624, %v676
      %v678 = vpop.f32.mrb[0].mxu0
      %v679 = vpop.f32.mrb[0].mxu0
      %v680 = vpop.f32.mrb[0].mxu0
      %681 = vdwg.mxu0
      %vm682 = vcmask 31744
      %v683 = vsel %vm682, %v677, 0.0
      %684 = vadd.xlane.f32.xlu0 %v683
      %v685 = vpop.xlane.xlu0 %684
      %v686 = vrcp.pop 4.0
      %v687 = vmul.f32 %v685, %v686
      %v688 = vsub.f32 %v677, %v687
      %v689 = vmul.f32 %v688, %v688
      %v690 = vsel %vm682, %v689, 0.0
      %691 = vadd.xlane.f32.xlu0 %v690
      %v692 = vpop.xlane.xlu0 %691
      %v693 = vmul.f32 %v692, %v686
      %v694 = vadd.f32 %v693, 1e-05
      %v695 = vrsqrt.pop %v694
      %v696 = vmul.f32 %v688, %v695
      %v697 = vld [vmem:[%s9] sm:$0x1]
      %v699 = vlaneseq
      %v700 = vshrl.u32 %v699, 7
      %v701 = vsub.s32 0, %v700
      %v702 = vrot.slane %v697, %v701
      %v704 = vmul.f32 %v696, %v702
      %v705 = vld [vmem:[%s10] sm:$0x1]
      %v707 = vlaneseq
      %v708 = vshrl.u32 %v707, 7
      %v709 = vsub.s32 0, %v708
      %v710 = vrot.slane %v705, %v709
      %v712 = vadd.f32 %v704, %v710
      %v713 = vtanh.pop %v712
      %v714 = vadd.f32 %v713, 1.0
      %v715 = vmul.f32 %v714, 0.5
      %716 = vst.msk [vmem:[%s381] sm:$0xff] %vm682, %v715
      %p717 = scmp.lt.s32.totalorder %s22, 3
      %s718 = scalar_select %p717, %s22, 3
      %s719 = smul.addr %s718, 8
      %s720 = scalar_lea.vmem %s11, %s719
      // Predicated region
      $region65: #{tpu_custom_call.1} parent=63 // pred_check
        %p721 = pneg %p276
      $region66: #{tpu_custom_call.1} parent=63 // pred_check_branch
        %723 = sbr.rel (%p721) target = $region68
      $region67: #{tpu_custom_call.1} parent=63 // pred_region
        _
      $region68: #{tpu_custom_call.1} parent=63 // pred_fallthru
        _
    $region64: #{tpu_custom_call.1} parent=5 // pred_fallthru
      _
    %p724 = scmp.le.s32.totalorder 2, %s17
    // Predicated region
    $region69: #{tpu_custom_call.1} parent=5 // pred_check
      %p725 = pneg %p724
    $region70: #{tpu_custom_call.1} parent=5 // pred_check_branch
      %727 = sbr.rel (%p725) target = $region72
    $region71: #{tpu_custom_call.1} parent=5 // pred_region
      %s728 = ssub.s32 %s17, 2
      // Predicated region
      $region73: #{tpu_custom_call.1} parent=71 // pred_check
        %p729 = pneg %p282
      $region74: #{tpu_custom_call.1} parent=71 // pred_check_branch
        %731 = sbr.rel (%p729) target = $region76
      $region75: #{tpu_custom_call.1} parent=71 // pred_region
        %p732 = scmp.lt.s32.totalorder %s23, 3
        %s733 = scalar_select %p732, %s23, 3
        %s734 = smul.addr %s733, 8
        %s735 = scalar_lea.vmem %s11, %s734
      $region76: #{tpu_custom_call.1} parent=71 // pred_fallthru
        _
    $region72: #{tpu_custom_call.1} parent=5 // pred_fallthru
      _
  $region6: #{tpu_custom_call.1} parent=0 // loop_footer
    %s21 = sadd.s32 1, %s17
  $region7: #{tpu_custom_call.1} parent=0 // loop_footer_branch
    %16 = sbr.rel target = $region3
  $region8: #{tpu_custom_call.1} parent=0 // loop_exit
    _

</llo_original>
